<compile_context>
chip_gen: v7x
topology: tpu7x:2x2x1
jax: 0.10.0
libtpu: 0.0.40
codegen_flags: <defaults>
</compile_context>

<pallas_src>
import functools
import math

import jax
import jax.numpy as jnp
from jax.experimental import pallas as pl
from jax.experimental.pallas import tpu as pltpu


def _round_up(x, m):
    return ((x + m - 1) // m) * m


def _pick_tm(num_rows, lpad, bytes_budget=2 * 1024 * 1024):
    """Row-tile size: multiple of 8, capped so the double-buffered input tile
    stays small on every generation (v5e 16 MiB / v7x 32 MiB scoped VMEM)."""
    tm = min(128, _round_up(num_rows, 8))
    max_tm = max(8, ((bytes_budget // (lpad * 4)) // 8) * 8)
    return max(8, min(tm, max_tm))


def _axis_loss_kernel(hm_ref, lbl_ref, w_ref, o_ref, *,
                      num_tokens, h_const, smooth, conf_minus_smooth, inv_l):
    """Per-row weighted label-smoothed KLDiv loss for one coordinate axis.

    hm_ref : (TM, Lpad) logits (any float dtype; cast to f32 after load)
    lbl_ref: (TM, 1)    int32 target bin index
    w_ref  : (TM, 1)    f32 per-row weight (0 for padded rows)
    o_ref  : (TM, 1)    f32 per-row weighted loss
    """
    logits = hm_ref[...].astype(jnp.float32)
    lane = jax.lax.broadcasted_iota(jnp.int32, logits.shape, 1)
    valid = lane < num_tokens

    # log-sum-exp over valid lanes only (padding forced to a huge negative).
    masked = jnp.where(valid, logits, jnp.float32(-1e30))
    m = jnp.max(masked, axis=1, keepdims=True)
    denom = jnp.sum(jnp.exp(masked - m), axis=1, keepdims=True)
    lse = m + jnp.log(denom)                                   # (TM, 1)

    # sum_j log_softmax_j and log_softmax at the label, via two reductions
    # (no normalized probability tensor is ever materialized).
    sum_logits = jnp.sum(jnp.where(valid, logits, 0.0), axis=1, keepdims=True)
    s_sum = sum_logits - num_tokens * lse                      # (TM, 1)
    onehot = lane == lbl_ref[...]                              # (TM, Lpad)
    logit_at = jnp.sum(jnp.where(onehot, logits, 0.0), axis=1, keepdims=True)
    s_label = logit_at - lse                                   # (TM, 1)

    # mean_j t_j * (log t_j - log_softmax_j) with the smoothed one-hot target.
    loss_rows = inv_l * (h_const - smooth * s_sum - conf_minus_smooth * s_label)
    o_ref[...] = loss_rows * w_ref[...]


def _axis_loss(logits, labels, weights, *, label_smoothing):
    """Sum over all (batch, joint) rows of weight * smoothed-KL loss, one axis."""
    num_rows, num_tokens = logits.shape
    assert num_tokens > 1

    lpad = _round_up(num_tokens, 128)
    tm = _pick_tm(num_rows, lpad)
    rows_pad = _round_up(num_rows, tm)

    hm = logits
    if lpad != num_tokens:
        hm = jnp.pad(hm, ((0, 0), (0, lpad - num_tokens)))     # masked in-kernel
    lbl = labels.reshape(num_rows, 1).astype(jnp.int32)
    wgt = weights.reshape(num_rows, 1).astype(jnp.float32)
    if rows_pad != num_rows:
        pad_r = rows_pad - num_rows
        hm = jnp.pad(hm, ((0, pad_r), (0, 0)))
        lbl = jnp.pad(lbl, ((0, pad_r), (0, 0)))
        wgt = jnp.pad(wgt, ((0, pad_r), (0, 0)))               # weight 0 -> drops out

    confidence = 1.0 - label_smoothing
    smooth = label_smoothing / (num_tokens - 1)
    h_const = label_smoothing * math.log(smooth)
    if confidence > 0.0:
        h_const += confidence * math.log(confidence)

    kernel = functools.partial(
        _axis_loss_kernel,
        num_tokens=num_tokens,
        h_const=h_const,
        smooth=smooth,
        conf_minus_smooth=confidence - smooth,
        inv_l=1.0 / num_tokens,
    )

    per_row = pl.pallas_call(
        kernel,
        out_shape=jax.ShapeDtypeStruct((rows_pad, 1), jnp.float32),
        grid=(rows_pad // tm,),
        in_specs=[
            pl.BlockSpec((tm, lpad), lambda i: (i, 0)),
            pl.BlockSpec((tm, 1), lambda i: (i, 0)),
            pl.BlockSpec((tm, 1), lambda i: (i, 0)),
        ],
        out_specs=pl.BlockSpec((tm, 1), lambda i: (i, 0)),
        compiler_params=pltpu.CompilerParams(
            dimension_semantics=("parallel",),
            vmem_limit_bytes=32 * 1024 * 1024,
        ),
    )(hm, lbl, wgt)
    return jnp.sum(per_row)


def nmt_norm_criterion(output_x, output_y, output_z, target, target_weight, *,
                       label_smoothing):
    """JAX/Pallas equivalent of NMTNORMCritierion(label_smoothing).forward."""
    if label_smoothing <= 0:
        # TODO(synk): label_smoothing == 0 selects NLLLoss(reduction='none') in
        # the reference, whose forward then calls torch.mean(..., dim=1) on a
        # 1-D tensor and raises; only the smoothed (KLDiv) path is implemented.
        raise NotImplementedError("only label_smoothing > 0 is supported")

    B, J = output_x.shape[0], output_x.shape[1]
    num_rows = B * J
    labels = target.astype(jnp.int32)                 # same truncation as .long()
    weights = target_weight.reshape(B, J, -1)[..., 0].reshape(num_rows)

    total = (
        _axis_loss(output_x.reshape(num_rows, -1),
                   labels[..., 0].reshape(num_rows), weights,
                   label_smoothing=label_smoothing)
        + _axis_loss(output_y.reshape(num_rows, -1),
                     labels[..., 1].reshape(num_rows), weights,
                     label_smoothing=label_smoothing)
        + _axis_loss(output_z.reshape(num_rows, -1),
                     labels[..., 2].reshape(num_rows), weights,
                     label_smoothing=label_smoothing)
    )
    # per-joint/axis .mean() over batch plus final /num_joints == 1/(B*J).
    return total * (1.0 / num_rows)


def _reference_loss(output_x, output_y, output_z, target, target_weight,
                    label_smoothing):
    """Pure-JAX transcription of the PyTorch forward pass (for verification)."""
    B, J = output_x.shape[0], output_x.shape[1]
    confidence = 1.0 - label_smoothing

    def criterion(dec_outs, labels):
        scores = jax.nn.log_softmax(dec_outs.astype(jnp.float32), axis=1)
        num_tokens = scores.shape[-1]
        tdata = labels.astype(jnp.int32)
        gtruth = jnp.full((B, num_tokens), label_smoothing / (num_tokens - 1),
                          jnp.float32)
        gtruth = gtruth.at[jnp.arange(B), tdata].set(confidence)
        kl = gtruth * (jnp.log(gtruth) - scores)   # KLDivLoss(reduction='none')
        return jnp.mean(kl, axis=1)

    loss = 0.0
    for idx in range(J):
        weight = target_weight[:, idx].reshape(B)
        coord_gt = target[:, idx]
        loss = loss + jnp.mean(criterion(output_x[:, idx], coord_gt[:, 0]) * weight)
        loss = loss + jnp.mean(criterion(output_y[:, idx], coord_gt[:, 1]) * weight)
        loss = loss + jnp.mean(criterion(output_z[:, idx], coord_gt[:, 2]) * weight)
    return loss / J


if __name__ == "__main__":
    # Small shapes consistent with the module: batch=2, joints=4, 32/32/16 bins.
    B, J, W, H, D = 2, 4, 32, 32, 16
    label_smoothing = 0.1

    key = jax.random.PRNGKey(0)
    kx, ky, kz, ktx, kty, ktz, kw = jax.random.split(key, 7)

    output_x = jax.random.normal(kx, (B, J, W), dtype=jnp.float32)
    output_y = jax.random.normal(ky, (B, J, H), dtype=jnp.float32)
    output_z = jax.random.normal(kz, (B, J, D), dtype=jnp.float32)
    target = jnp.concatenate(
        [jax.random.randint(ktx, (B, J, 1), 0, W),
         jax.random.randint(kty, (B, J, 1), 0, H),
         jax.random.randint(ktz, (B, J, 1), 0, D)], axis=-1).astype(jnp.float32)
    target_weight = (jax.random.uniform(kw, (B, J, 1)) > 0.2).astype(jnp.float32)

    loss = nmt_norm_criterion(output_x, output_y, output_z, target,
                              target_weight, label_smoothing=label_smoothing)
    loss = jax.block_until_ready(loss)

    ref = _reference_loss(output_x, output_y, output_z, target, target_weight,
                          label_smoothing)
    assert jnp.allclose(loss, ref, rtol=1e-4, atol=1e-5), (loss, ref)

    print("KERNEL_OK")
</pallas_src>

<mosaic_0001>
module attributes {stable_mosaic.version = 11 : i64} {
  func.func @_axis_loss_kernel(%arg0: i32, %arg1: memref<8x128xf32, #tpu.memory_space<vmem>>, %arg2: memref<8x1xi32, #tpu.memory_space<vmem>>, %arg3: memref<8x1xf32, #tpu.memory_space<vmem>>, %arg4: memref<8x1xf32, #tpu.memory_space<vmem>>) attributes {dimension_semantics = [#tpu.dimension_semantics<parallel>], iteration_bounds = array<i64: 1>, scalar_prefetch = 0 : i64, scratch_operands = 0 : i64, tpu.core_type = #tpu.core_type<tc>, window_params = [{transform_indices = @transform_0, window_bounds = array<i64: 8, 128>}, {transform_indices = @transform_1, window_bounds = array<i64: 8, 1>}, {transform_indices = @transform_2, window_bounds = array<i64: 8, 1>}, {transform_indices = @transform_3, window_bounds = array<i64: 8, 1>}]} {
    %c0 = arith.constant 0 : index
    %c0_0 = arith.constant 0 : index
    %0 = vector.load %arg1[%c0, %c0_0] : memref<8x128xf32, #tpu.memory_space<vmem>>, vector<8x128xf32>
    %1 = tpu.iota {dimensions = array<i32: 1>} : vector<8x128xi32>
    %c32_i32 = arith.constant 32 : i32
    %2 = vector.broadcast %c32_i32 : i32 to vector<8x128xi32>
    %3 = arith.cmpi slt, %1, %2 : vector<8x128xi32>
    %cst = arith.constant -1.000000e+30 : f32
    %4 = vector.broadcast %cst : f32 to vector<8x128xf32>
    %5 = arith.select %3, %0, %4 : vector<8x128xi1>, vector<8x128xf32>
    %cst_1 = arith.constant dense<0xFF800000> : vector<8xf32>
    %6 = vector.multi_reduction <maximumf>, %5, %cst_1 [1] : vector<8x128xf32> to vector<8xf32>
    %7 = vector.shape_cast %6 : vector<8xf32> to vector<8x1xf32>
    %8 = vector.broadcast %7 : vector<8x1xf32> to vector<8x128xf32>
    %9 = arith.subf %5, %8 : vector<8x128xf32>
    %10 = math.exp %9 : vector<8x128xf32>
    %cst_2 = arith.constant dense<0.000000e+00> : vector<8xf32>
    %11 = vector.multi_reduction <add>, %10, %cst_2 [1] : vector<8x128xf32> to vector<8xf32>
    %12 = vector.shape_cast %11 : vector<8xf32> to vector<8x1xf32>
    %13 = math.log %12 : vector<8x1xf32>
    %14 = arith.addf %7, %13 : vector<8x1xf32>
    %cst_3 = arith.constant 0.000000e+00 : f32
    %15 = vector.broadcast %cst_3 : f32 to vector<8x128xf32>
    %16 = arith.select %3, %0, %15 : vector<8x128xi1>, vector<8x128xf32>
    %cst_4 = arith.constant dense<0.000000e+00> : vector<8xf32>
    %17 = vector.multi_reduction <add>, %16, %cst_4 [1] : vector<8x128xf32> to vector<8xf32>
    %18 = vector.shape_cast %17 : vector<8xf32> to vector<8x1xf32>
    %cst_5 = arith.constant 3.200000e+01 : f32
    %19 = vector.broadcast %cst_5 : f32 to vector<8x1xf32>
    %20 = arith.mulf %19, %14 : vector<8x1xf32>
    %21 = arith.subf %18, %20 : vector<8x1xf32>
    %c0_6 = arith.constant 0 : index
    %c0_7 = arith.constant 0 : index
    %22 = vector.load %arg2[%c0_6, %c0_7] : memref<8x1xi32, #tpu.memory_space<vmem>>, vector<8x1xi32>
    %23 = vector.broadcast %22 : vector<8x1xi32> to vector<8x128xi32>
    %24 = arith.cmpi eq, %1, %23 : vector<8x128xi32>
    %cst_8 = arith.constant 0.000000e+00 : f32
    %25 = vector.broadcast %cst_8 : f32 to vector<8x128xf32>
    %26 = arith.select %24, %0, %25 : vector<8x128xi1>, vector<8x128xf32>
    %cst_9 = arith.constant dense<0.000000e+00> : vector<8xf32>
    %27 = vector.multi_reduction <add>, %26, %cst_9 [1] : vector<8x128xf32> to vector<8xf32>
    %28 = vector.shape_cast %27 : vector<8xf32> to vector<8x1xf32>
    %29 = arith.subf %28, %14 : vector<8x1xf32>
    %cst_10 = arith.constant 0.0032258064 : f32
    %30 = vector.broadcast %cst_10 : f32 to vector<8x1xf32>
    %31 = arith.mulf %30, %21 : vector<8x1xf32>
    %cst_11 = arith.constant -0.668481708 : f32
    %32 = vector.broadcast %cst_11 : f32 to vector<8x1xf32>
    %33 = arith.subf %32, %31 : vector<8x1xf32>
    %cst_12 = arith.constant 0.896774172 : f32
    %34 = vector.broadcast %cst_12 : f32 to vector<8x1xf32>
    %35 = arith.mulf %34, %29 : vector<8x1xf32>
    %36 = arith.subf %33, %35 : vector<8x1xf32>
    %cst_13 = arith.constant 3.125000e-02 : f32
    %37 = vector.broadcast %cst_13 : f32 to vector<8x1xf32>
    %38 = arith.mulf %37, %36 : vector<8x1xf32>
    %c0_14 = arith.constant 0 : index
    %c0_15 = arith.constant 0 : index
    %39 = vector.load %arg3[%c0_14, %c0_15] : memref<8x1xf32, #tpu.memory_space<vmem>>, vector<8x1xf32>
    %40 = arith.mulf %38, %39 : vector<8x1xf32>
    %c0_16 = arith.constant 0 : index
    %c0_17 = arith.constant 0 : index
    %41 = vector.load %arg4[%c0_16, %c0_17] : memref<8x1xf32, #tpu.memory_space<vmem>>, vector<8x1xf32>
    tpu.vector_store %arg4[%c0_16, %c0_17], %40 {strides = array<i32>} : memref<8x1xf32, #tpu.memory_space<vmem>>, vector<8x1xf32>,
    return
  }
  func.func @transform_0(%arg0: i32) -> (i32, i32) {
    %c0_i32 = arith.constant 0 : i32
    %c0_i32_0 = arith.constant 0 : i32
    return %arg0, %c0_i32 : i32, i32
  }
  func.func @transform_1(%arg0: i32) -> (i32, i32) {
    %c0_i32 = arith.constant 0 : i32
    %c0_i32_0 = arith.constant 0 : i32
    return %arg0, %c0_i32 : i32, i32
  }
  func.func @transform_2(%arg0: i32) -> (i32, i32) {
    %c0_i32 = arith.constant 0 : i32
    %c0_i32_0 = arith.constant 0 : i32
    return %arg0, %c0_i32 : i32, i32
  }
  func.func @transform_3(%arg0: i32) -> (i32, i32) {
    %c0_i32 = arith.constant 0 : i32
    %c0_i32_0 = arith.constant 0 : i32
    return %arg0, %c0_i32 : i32, i32
  }
}

</mosaic_0001>

<llo_original>
// kernel: tpu_custom_call.1
$region0: #{tpu_custom_call.1}
  #allocation0 [shape = 'u32[]', space=smem, size = 0x4, offset = 0x4, fixed_abs, tag = 'smem constant byte address 0x4 - core index']
  #allocation1 [shape = 'u32[144,128]{1,0:T(1,128)}', space=vmem, size = 0x12000, scoped, tag = 'internal scratch']
  %s0 = inlined_call_operand.vmem [shape: f32[8,128], index: 0, kind: input, shape index: {}]
  %s1 = inlined_call_operand.vmem [shape: s32[8,1], index: 1, kind: input, shape index: {}]
  %s2 = inlined_call_operand.vmem [shape: f32[8,1], index: 2, kind: input, shape index: {}]
  %s3 = inlined_call_operand.vmem [shape: f32[8,1], index: 3, kind: output, shape index: {}]
  %s4 = sld [smem:[#allocation0]]
  $region22: #{tpu_custom_call.1} parent=0
    _
  %s6 = ssub.s32 1, %s4
  %s7 = scalar_select 0, %s6, %s4
  // Predicated region
  $region2: #{tpu_custom_call.1} parent=0 // pred_check
    _
  $region3: #{tpu_custom_call.1} parent=0 // pred_check_branch
    %9 = sbr.rel (0) target = $region5
  $region4: #{tpu_custom_call.1} parent=0 // pred_region
    _
  $region5: #{tpu_custom_call.1} parent=0 // pred_fallthru
    _
  // Predicated region
  $region6: #{tpu_custom_call.1} parent=0 // pred_check
    _
  $region7: #{tpu_custom_call.1} parent=0 // pred_check_branch
    %11 = sbr.rel (0) target = $region9
  $region8: #{tpu_custom_call.1} parent=0 // pred_region
    _
  $region9: #{tpu_custom_call.1} parent=0 // pred_fallthru
    _
  // Predicated region
  $region10: #{tpu_custom_call.1} parent=0 // pred_check
    _
  $region11: #{tpu_custom_call.1} parent=0 // pred_check_branch
    %13 = sbr.rel (0) target = $region13
  $region12: #{tpu_custom_call.1} parent=0 // pred_region
    _
  $region13: #{tpu_custom_call.1} parent=0 // pred_fallthru
    _
  %v14 = vld [vmem:[%s0] sm:$0xff]
  %v15 = vlaneseq
  %v16 = vand.u32 %v15, 127
  %vm17 = vcmp.lt.s32.totalorder %v16, 32
  %v18 = vsel %vm17, %v14, -1e+30
  %19 = vmax.xlane.f32.xlu0 %v18
  %v20 = vpop.xlane.xlu0 %19
  %v21 = vsub.f32 %v18, %v20
  %v22 = vmul.f32 %v21, 1.442695
  %v23 = vpow.pop %v22
  %24 = vadd.xlane.f32.xlu0 %v23
  %v25 = vpop.xlane.xlu0 %24
  %v26 = vlog2.pop %v25
  %v27 = vmul.f32 %v26, 0.6931472
  %v28 = vadd.f32 %v20, %v27
  %v29 = vsel %vm17, %v14, 0.0
  %30 = vadd.xlane.f32.xlu0 %v29
  %v31 = vpop.xlane.xlu0 %30
  %v32 = vmul.f32 %v28, 32.0
  %v33 = vsub.f32 %v31, %v32
  %v34 = vld [vmem:[%s1] sm:$0xff]
  %35 = vset.pattern.permute.xlu0 0
  %36 = vperm.xlu0 %35, %v34
  %v37 = vpop.permute.xlu0 %36
  %vm38 = vcmp.eq.s32.totalorder %v16, %v37
  %v39 = vsel %vm38, %v14, 0.0
  %40 = vadd.xlane.f32.xlu0 %v39
  %v41 = vpop.xlane.xlu0 %40
  %v42 = vsub.f32 %v41, %v28
  %v43 = vmul.f32 %v33, 0.0032258064
  %v44 = vsub.f32 -0.6684817, %v43
  %v45 = vmul.f32 %v42, 0.8967742
  %v46 = vsub.f32 %v44, %v45
  %v47 = vmul.f32 %v46, 0.03125
  %v48 = vld [vmem:[%s2] sm:$0xff]
  %v49 = vmul.f32 %v47, %v48
  %vm50 = vcmask 7168
  %51 = vst.msk [vmem:[%s3] sm:$0xff] %vm50, %v49
  // Predicated region
  $region14: #{tpu_custom_call.1} parent=0 // pred_check
    _
  $region15: #{tpu_custom_call.1} parent=0 // pred_check_branch
    %53 = sbr.rel (0) target = $region17
  $region16: #{tpu_custom_call.1} parent=0 // pred_region
    _
  $region17: #{tpu_custom_call.1} parent=0 // pred_fallthru
    _
  // Predicated region
  $region18: #{tpu_custom_call.1} parent=0 // pred_check
    _
  $region19: #{tpu_custom_call.1} parent=0 // pred_check_branch
    %55 = sbr.rel (0) target = $region21
  $region20: #{tpu_custom_call.1} parent=0 // pred_region
    _
  $region21: #{tpu_custom_call.1} parent=0 // pred_fallthru
    _

</llo_original>
